<compile_context>
chip_gen: v7x
topology: tpu7x:2x2x1
jax: 0.10.0
libtpu: 0.0.40
codegen_flags: <defaults>
</compile_context>

<pallas_src>
from functools import partial

import numpy as np
import jax
import jax.numpy as jnp
from jax import lax
from jax.experimental import pallas as pl
from jax.experimental.pallas import tpu as pltpu


def _sublane_pack(itemsize: int) -> int:
    """Rows per packed sublane group: 8 for f32, 16 for bf16/f16, 32 for int8/fp8."""
    return max(8, 32 // max(1, itemsize))


def _tensorcores_per_chip() -> int:
    """Best-effort TensorCore count per chip (v7x has 2; v5e/v6e have 1)."""
    try:
        kind = jax.devices()[0].device_kind.lower()
    except Exception:
        return 1
    return 2 if "v7" in kind else 1


def _pick_tiling(rows_total, cols, itemsize, tile_rows=None, group_rows=None,
                 target_tile_bytes=8 * 1024 * 1024, target_group_bytes=128 * 1024):
    """Choose (tile_rows, group_rows): dtype-sublane aligned, group divides tile divides rows."""
    sub = _sublane_pack(itemsize)
    assert rows_total % sub == 0, (
        f"flattened rows ({rows_total}) must be a multiple of {sub} for itemsize {itemsize}")
    assert cols % 128 == 0, f"last dim ({cols}) must be a multiple of 128"

    if group_rows is None:
        group_rows = max(sub, (target_group_bytes // (cols * 4)) // sub * sub)
    assert group_rows % sub == 0, f"group_rows ({group_rows}) must be a multiple of {sub}"
    group_rows = min(group_rows, rows_total)
    while rows_total % group_rows != 0:
        group_rows -= sub

    if tile_rows is None:
        tile_rows = max(group_rows,
                        (target_tile_bytes // (cols * itemsize)) // group_rows * group_rows)
        tile_rows = min(tile_rows, rows_total)
        while rows_total % tile_rows != 0:
            tile_rows -= group_rows
    else:
        assert tile_rows % sub == 0, (
            f"tile_rows ({tile_rows}) must be a multiple of {sub} for itemsize {itemsize}")
        assert rows_total % tile_rows == 0, "tile_rows must divide the flattened row count"
        group_rows = min(group_rows, tile_rows)
        while tile_rows % group_rows != 0:
            group_rows -= sub

    assert tile_rows % group_rows == 0
    return tile_rows, group_rows


def _lse_partial_kernel(x_ref, m_out_ref, s_out_ref, m_acc, s_acc, *, group_rows):
    """Online per-lane logsumexp state over the row tiles of one split.

    x_ref               : (TR, C) VMEM tile of the flattened neg_logits (native dtype)
    m_out_ref/s_out_ref : (1, 8, C) VMEM output blocks — per-split partial (max, scaled-sum)
    m_acc/s_acc         : (8, C) VMEM scratch — running per-lane max / scaled sum
    """
    i = pl.program_id(1)

    @pl.when(i == 0)
    def _():
        m_acc[...] = jnp.full_like(m_acc, -jnp.inf)
        s_acc[...] = jnp.zeros_like(s_acc)

    tr, c = x_ref.shape
    n_groups = tr // group_rows
    gsub = group_rows // 8

    def load_group(g):
        start = g * group_rows
        if not isinstance(start, int):
            start = pl.multiple_of(start, group_rows)
        # Cast in-kernel; the reshape keeps the lane dim and splits rows into (8, C) vreg
        # slabs so the reductions below are elementwise across vregs (VPU), not XLU.
        return x_ref[pl.ds(start, group_rows), :].astype(jnp.float32).reshape(gsub, 8, c)

    def reduce_groups(body, init):
        # Short fixed trip counts: static (fully unrolled) Python loop for LLO visibility;
        # long trip counts: lax.fori_loop to bound code size.
        if n_groups <= 8:
            acc = init
            for g in range(n_groups):
                acc = body(g, acc)
            return acc
        return lax.fori_loop(0, n_groups, body, init)

    # Pass 1: per-lane max over this tile (bounded working set: one group + one (8,C) acc).
    def max_body(g, m_run):
        return jnp.maximum(m_run, jnp.max(load_group(g), axis=0))

    m_tile = reduce_groups(max_body, jnp.full((8, c), -jnp.inf, jnp.float32))

    m_old = m_acc[...]                               # (8, C)
    m_new = jnp.maximum(m_old, m_tile)
    # Guard all -inf lanes so exp(-inf - -inf) never produces NaN (masked/-inf logits).
    m_safe = jnp.where(jnp.isneginf(m_new), jnp.float32(0.0), m_new)

    # Pass 2: exp-sum against the tile-global safe max (EUP exp, VPU add).
    def sum_body(g, s_run):
        return s_run + jnp.sum(jnp.exp(load_group(g) - m_safe[None]), axis=0)

    s_tile = reduce_groups(sum_body, jnp.zeros((8, c), jnp.float32))

    s_acc[...] = s_acc[...] * jnp.exp(m_old - m_safe) + s_tile
    m_acc[...] = m_new

    @pl.when(i == pl.num_programs(1) - 1)
    def _():
        m_out_ref[0] = m_acc[...]
        s_out_ref[0] = s_acc[...]


def momentum_baseline_forward(neg_logits, log_moving_average, momentum_logit, *,
                              training=True, tile_rows=None, group_rows=None,
                              max_parallel=None):
    """Functional forward of MomentumBaseline. Returns the updated log moving average (1,)."""
    if not training:
        return log_moving_average

    C = neg_logits.shape[-1]
    x2d = neg_logits.reshape(-1, C)                       # native dtype, no f32 copy in HBM
    R = x2d.shape[0]
    itemsize = jnp.dtype(x2d.dtype).itemsize
    tile_rows, group_rows = _pick_tiling(R, C, itemsize,
                                         tile_rows=tile_rows, group_rows=group_rows)
    # TODO(synk): pad rows/cols with -inf (keeping log_n at the true element count) to support
    # shapes that are not multiples of the tile granularity, and lane-block very wide C.

    n_tiles = R // tile_rows
    if max_parallel is None:
        max_parallel = _tensorcores_per_chip()            # 1 on v5e/v6e, 2 on v7x
    P = max_parallel if (max_parallel > 1 and n_tiles >= max_parallel
                         and n_tiles % max_parallel == 0) else 1
    T = n_tiles // P

    # Only request an explicit per-TensorCore split when the chip actually has >1 core.
    lead_sem = pltpu.PARALLEL
    if P > 1 and _tensorcores_per_chip() > 1:
        lead_sem = getattr(pltpu, "CORE_PARALLEL", pltpu.PARALLEL)

    m_all, s_all = pl.pallas_call(
        partial(_lse_partial_kernel, group_rows=group_rows),
        out_shape=(jax.ShapeDtypeStruct((P, 8, C), jnp.float32),
                   jax.ShapeDtypeStruct((P, 8, C), jnp.float32)),
        grid_spec=pltpu.PrefetchScalarGridSpec(
            num_scalar_prefetch=0,
            grid=(P, T),
            in_specs=[pl.BlockSpec((tile_rows, C), lambda p, i, T=T: (p * T + i, 0))],
            out_specs=(pl.BlockSpec((1, 8, C), lambda p, i: (p, 0, 0)),
                       pl.BlockSpec((1, 8, C), lambda p, i: (p, 0, 0))),
            scratch_shapes=[pltpu.VMEM((8, C), jnp.float32),   # running per-lane max
                            pltpu.VMEM((8, C), jnp.float32)],  # running per-lane scaled sum
        ),
        compiler_params=pltpu.CompilerParams(
            dimension_semantics=(lead_sem, pltpu.ARBITRARY),
            vmem_limit_bytes=32 * 1024 * 1024),
    )(x2d)

    # Tiny global combine (P*8*C floats) + momentum interpolation — negligible wrapper epilogue.
    log_n = jnp.float32(np.log(neg_logits.size))
    m_g = jnp.max(m_all)
    m_g_safe = jnp.where(jnp.isneginf(m_g), jnp.float32(0.0), m_g)
    total = jnp.sum(s_all * jnp.exp(m_all - m_g_safe))
    log_batch_avg = m_g + jnp.log(total) - log_n          # logmeanexp over all elements

    lma = log_moving_average.astype(jnp.float32)
    a = momentum_logit.astype(jnp.float32)
    out = jnp.logaddexp(lma + jax.nn.log_sigmoid(a),
                        log_batch_avg + jax.nn.log_sigmoid(-a))
    return out.reshape(log_moving_average.shape)
    # TODO(synk): custom backward of LogMeanExp (grad = grad_out * exp(x - (lma_new + log_n)))
    # is not implemented here; this is the forward pass only.


if __name__ == "__main__":
    key = jax.random.PRNGKey(0)

    # Deterministic buffers (as in __init__): log_moving_average = zeros(1),
    # momentum_logit = logit(momentum) with momentum = 0.9.
    momentum = 0.9
    log_moving_average = jnp.zeros((1,), dtype=jnp.float32)
    momentum_logit = jnp.full((1,), float(np.log(momentum / (1.0 - momentum))), dtype=jnp.float32)

    def reference(neg_logits):
        lba = jax.scipy.special.logsumexp(neg_logits.astype(jnp.float32)) - np.log(neg_logits.size)
        la = jax.nn.log_sigmoid(momentum_logit)
        l1a = jax.nn.log_sigmoid(-momentum_logit)
        return jnp.logaddexp(log_moving_average + la, lba + l1a)

    k1, k2, k3 = jax.random.split(key, 3)

    # 1) f32 logits, fully automatic tiling (whole array fits → single grid step, static inner loop).
    x_f32 = jax.random.normal(k1, (64, 256), dtype=jnp.float32)
    out = jax.block_until_ready(
        momentum_baseline_forward(x_f32, log_moving_average, momentum_logit))
    assert out.shape == (1,)
    assert np.allclose(np.asarray(out), np.asarray(reference(x_f32)), rtol=1e-5, atol=1e-5), \
        (out, reference(x_f32))

    # 2) bf16 logits streamed natively, forced small tile → multi-step online accumulation
    #    plus the 2-way split path (leading "parallel"/CORE_PARALLEL axis).
    x_bf16 = (jax.random.normal(k2, (128, 256), dtype=jnp.float32) * 2.0).astype(jnp.bfloat16)
    out2 = jax.block_until_ready(
        momentum_baseline_forward(x_bf16, log_moving_average, momentum_logit,
                                  tile_rows=16, max_parallel=2))
    assert out2.shape == (1,)
    assert np.allclose(np.asarray(out2), np.asarray(reference(x_bf16)), rtol=1e-4, atol=1e-4), \
        (out2, reference(x_bf16))

    # 3) f32 logits with a small forced group size → exercises the dynamic fori_loop
    #    (n_groups > 8) two-pass streaming path inside a single tile.
    x_big = jax.random.normal(k3, (512, 256), dtype=jnp.float32)
    out3 = jax.block_until_ready(
        momentum_baseline_forward(x_big, log_moving_average, momentum_logit, group_rows=32))
    assert out3.shape == (1,)
    assert np.allclose(np.asarray(out3), np.asarray(reference(x_big)), rtol=1e-5, atol=1e-5), \
        (out3, reference(x_big))

    # 4) eval mode returns the buffer unchanged.
    out4 = momentum_baseline_forward(x_f32, log_moving_average, momentum_logit, training=False)
    assert np.allclose(np.asarray(out4), np.asarray(log_moving_average))

    print("KERNEL_OK")
</pallas_src>

<mosaic_0001>
module attributes {stable_mosaic.version = 11 : i64} {
  func.func @_lse_partial_kernel(%arg0: i32, %arg1: i32, %arg2: memref<64x256xf32, #tpu.memory_space<vmem>>, %arg3: memref<1x8x256xf32, #tpu.memory_space<vmem>>, %arg4: memref<1x8x256xf32, #tpu.memory_space<vmem>>, %arg5: memref<8x256xf32, #tpu.memory_space<vmem>>, %arg6: memref<8x256xf32, #tpu.memory_space<vmem>>) attributes {dimension_semantics = [#tpu.dimension_semantics<parallel>, #tpu.dimension_semantics<arbitrary>], iteration_bounds = array<i64: 1, 1>, scalar_prefetch = 0 : i64, scratch_operands = 2 : i64, tpu.core_type = #tpu.core_type<tc>, window_params = [{transform_indices = @transform_0, window_bounds = array<i64: 64, 256>}, {transform_indices = @transform_1, window_bounds = array<i64: 1, 8, 256>}, {transform_indices = @transform_2, window_bounds = array<i64: 1, 8, 256>}]} {
    %c0_i32 = arith.constant 0 : i32
    %0 = arith.cmpi eq, %arg1, %c0_i32 : i32
    %1 = arith.extui %0 : i1 to i32
    %c0_i32_0 = arith.constant 0 : i32
    %2 = arith.cmpi ne, %1, %c0_i32_0 : i32
    scf.if %2 {
      %cst_19 = arith.constant 0xFF800000 : f32
      %33 = vector.broadcast %cst_19 : f32 to vector<8x256xf32>
      %c0_20 = arith.constant 0 : index
      %c0_21 = arith.constant 0 : index
      %34 = vector.load %arg5[%c0_20, %c0_21] : memref<8x256xf32, #tpu.memory_space<vmem>>, vector<8x256xf32>
      tpu.vector_store %arg5[%c0_20, %c0_21], %33 {strides = array<i32>} : memref<8x256xf32, #tpu.memory_space<vmem>>, vector<8x256xf32>,
      %cst_22 = arith.constant 0.000000e+00 : f32
      %35 = vector.broadcast %cst_22 : f32 to vector<8x256xf32>
      %c0_23 = arith.constant 0 : index
      %c0_24 = arith.constant 0 : index
      %36 = vector.load %arg6[%c0_23, %c0_24] : memref<8x256xf32, #tpu.memory_space<vmem>>, vector<8x256xf32>
      tpu.vector_store %arg6[%c0_23, %c0_24], %35 {strides = array<i32>} : memref<8x256xf32, #tpu.memory_space<vmem>>, vector<8x256xf32>,
    } else {
    }
    %cst = arith.constant 0xFF800000 : f32
    %3 = vector.broadcast %cst : f32 to vector<8x256xf32>
    %c0 = arith.constant 0 : index
    %c0_1 = arith.constant 0 : index
    %4 = vector.load %arg2[%c0, %c0_1] : memref<64x256xf32, #tpu.memory_space<vmem>>, vector<64x256xf32>
    %5 = vector.shape_cast %4 : vector<64x256xf32> to vector<8x8x256xf32>
    %cst_2 = arith.constant dense<0xFF800000> : vector<8x256xf32>
    %6 = vector.multi_reduction <maximumf>, %5, %cst_2 [0] : vector<8x8x256xf32> to vector<8x256xf32>
    %7 = arith.maximumf %3, %6 : vector<8x256xf32>
    %c0_3 = arith.constant 0 : index
    %c0_4 = arith.constant 0 : index
    %8 = vector.load %arg5[%c0_3, %c0_4] : memref<8x256xf32, #tpu.memory_space<vmem>>, vector<8x256xf32>
    %9 = arith.maximumf %8, %7 : vector<8x256xf32>
    %cst_5 = arith.constant 0xFF800000 : f32
    %10 = vector.broadcast %cst_5 : f32 to vector<8x256xf32>
    %11 = arith.cmpf oeq, %9, %10 : vector<8x256xf32>
    %cst_6 = arith.constant 0.000000e+00 : f32
    %12 = vector.broadcast %cst_6 : f32 to vector<8x256xf32>
    %13 = arith.select %11, %12, %9 : vector<8x256xi1>, vector<8x256xf32>
    %cst_7 = arith.constant 0.000000e+00 : f32
    %14 = vector.broadcast %cst_7 : f32 to vector<8x256xf32>
    %c0_8 = arith.constant 0 : index
    %c0_9 = arith.constant 0 : index
    %15 = vector.load %arg2[%c0_8, %c0_9] : memref<64x256xf32, #tpu.memory_space<vmem>>, vector<64x256xf32>
    %16 = vector.shape_cast %15 : vector<64x256xf32> to vector<8x8x256xf32>
    %17 = vector.shape_cast %13 : vector<8x256xf32> to vector<1x8x256xf32>
    %18 = vector.broadcast %17 : vector<1x8x256xf32> to vector<8x8x256xf32>
    %19 = arith.subf %16, %18 : vector<8x8x256xf32>
    %20 = math.exp %19 : vector<8x8x256xf32>
    %cst_10 = arith.constant dense<0.000000e+00> : vector<8x256xf32>
    %21 = vector.multi_reduction <add>, %20, %cst_10 [0] : vector<8x8x256xf32> to vector<8x256xf32>
    %22 = arith.addf %14, %21 : vector<8x256xf32>
    %c0_11 = arith.constant 0 : index
    %c0_12 = arith.constant 0 : index
    %23 = vector.load %arg6[%c0_11, %c0_12] : memref<8x256xf32, #tpu.memory_space<vmem>>, vector<8x256xf32>
    %24 = arith.subf %8, %13 : vector<8x256xf32>
    %25 = math.exp %24 : vector<8x256xf32>
    %26 = arith.mulf %23, %25 : vector<8x256xf32>
    %27 = arith.addf %26, %22 : vector<8x256xf32>
    %c0_13 = arith.constant 0 : index
    %c0_14 = arith.constant 0 : index
    %28 = vector.load %arg6[%c0_13, %c0_14] : memref<8x256xf32, #tpu.memory_space<vmem>>, vector<8x256xf32>
    tpu.vector_store %arg6[%c0_13, %c0_14], %27 {strides = array<i32>} : memref<8x256xf32, #tpu.memory_space<vmem>>, vector<8x256xf32>,
    %c0_15 = arith.constant 0 : index
    %c0_16 = arith.constant 0 : index
    %29 = vector.load %arg5[%c0_15, %c0_16] : memref<8x256xf32, #tpu.memory_space<vmem>>, vector<8x256xf32>
    tpu.vector_store %arg5[%c0_15, %c0_16], %9 {strides = array<i32>} : memref<8x256xf32, #tpu.memory_space<vmem>>, vector<8x256xf32>,
    %c0_i32_17 = arith.constant 0 : i32
    %30 = arith.cmpi eq, %arg1, %c0_i32_17 : i32
    %31 = arith.extui %30 : i1 to i32
    %c0_i32_18 = arith.constant 0 : i32
    %32 = arith.cmpi ne, %31, %c0_i32_18 : i32
    scf.if %32 {
      %c0_19 = arith.constant 0 : index
      %c0_20 = arith.constant 0 : index
      %33 = vector.load %arg5[%c0_19, %c0_20] : memref<8x256xf32, #tpu.memory_space<vmem>>, vector<8x256xf32>
      %c0_21 = arith.constant 0 : index
      %c0_22 = arith.constant 0 : index
      %c0_23 = arith.constant 0 : index
      %34 = vector.load %arg3[%c0_21, %c0_22, %c0_23] : memref<1x8x256xf32, #tpu.memory_space<vmem>>, vector<1x8x256xf32>
      %35 = vector.shape_cast %34 : vector<1x8x256xf32> to vector<8x256xf32>
      %36 = vector.shape_cast %33 : vector<8x256xf32> to vector<1x8x256xf32>
      tpu.vector_store %arg3[%c0_21, %c0_22, %c0_23], %36 {strides = array<i32>} : memref<1x8x256xf32, #tpu.memory_space<vmem>>, vector<1x8x256xf32>,
      %c0_24 = arith.constant 0 : index
      %c0_25 = arith.constant 0 : index
      %37 = vector.load %arg6[%c0_24, %c0_25] : memref<8x256xf32, #tpu.memory_space<vmem>>, vector<8x256xf32>
      %c0_26 = arith.constant 0 : index
      %c0_27 = arith.constant 0 : index
      %c0_28 = arith.constant 0 : index
      %38 = vector.load %arg4[%c0_26, %c0_27, %c0_28] : memref<1x8x256xf32, #tpu.memory_space<vmem>>, vector<1x8x256xf32>
      %39 = vector.shape_cast %38 : vector<1x8x256xf32> to vector<8x256xf32>
      %40 = vector.shape_cast %37 : vector<8x256xf32> to vector<1x8x256xf32>
      tpu.vector_store %arg4[%c0_26, %c0_27, %c0_28], %40 {strides = array<i32>} : memref<1x8x256xf32, #tpu.memory_space<vmem>>, vector<1x8x256xf32>,
    } else {
    }
    return
  }
  func.func @transform_0(%arg0: i32, %arg1: i32) -> (i32, i32) {
    %c1_i32 = arith.constant 1 : i32
    %0 = arith.muli %arg0, %c1_i32 : i32
    %1 = arith.addi %0, %arg1 : i32
    %c0_i32 = arith.constant 0 : i32
    %c0_i32_0 = arith.constant 0 : i32
    return %1, %c0_i32 : i32, i32
  }
  func.func @transform_1(%arg0: i32, %arg1: i32) -> (i32, i32, i32) {
    %c0_i32 = arith.constant 0 : i32
    %c0_i32_0 = arith.constant 0 : i32
    %c0_i32_1 = arith.constant 0 : i32
    return %arg0, %c0_i32, %c0_i32_0 : i32, i32, i32
  }
  func.func @transform_2(%arg0: i32, %arg1: i32) -> (i32, i32, i32) {
    %c0_i32 = arith.constant 0 : i32
    %c0_i32_0 = arith.constant 0 : i32
    %c0_i32_1 = arith.constant 0 : i32
    return %arg0, %c0_i32, %c0_i32_0 : i32, i32, i32
  }
}

</mosaic_0001>

<llo_original>
// kernel: tpu_custom_call.1
$region0: #{tpu_custom_call.1}
  #allocation0 [shape = 'u32[]', space=smem, size = 0x4, offset = 0x4, fixed_abs, tag = 'smem constant byte address 0x4 - core index']
  #allocation1 [shape = 'u32[144,128]{1,0:T(1,128)}', space=vmem, size = 0x12000, scoped, tag = 'internal scratch']
  #allocation2 [shape = 'f32[8,256]{1,0:T(8,128)}', space=vmem, size = 0x2000, scoped, tag = 'scratch operand']
  #allocation3 [shape = 'f32[8,256]{1,0:T(8,128)}', space=vmem, size = 0x2000, scoped, tag = 'scratch operand']
  %s0 = inlined_call_operand.hbm [shape: f32[64,256], index: 0, kind: input, shape index: {}]
  %s1 = inlined_call_operand.hbm [shape: f32[1,8,256], index: 1, kind: output, shape index: {0}]
  %s2 = inlined_call_operand.hbm [shape: f32[1,8,256], index: 2, kind: output, shape index: {1}]
  %3 = xla_tuple %s1, %s2
  %s4 = sld [smem:[#allocation0]]
  $region34: #{tpu_custom_call.1} parent=0
    _
  %s6 = ssub.s32 1, %s4
  %s7 = scalar_select 0, %s6, %s4
  $region1: #{tpu_custom_call.1} parent=0
    #allocation4 [shape = 'u8[65536]{0}', space=vmem, size = 0x10000, scoped, tag = 'input window, operand 0, single buffered']
    #allocation5 [shape = 's32[1]{0}', space=sflag, size = 0x4, scoped, tag = 'scoped memory for tpu_custom_call.1']
    #allocation6 [shape = 's32[1]{0}', space=sflag, size = 0x4, scoped, tag = 'scoped memory for tpu_custom_call.1']
    #allocation7 [shape = 'u8[8192]{0}', space=vmem, size = 0x2000, scoped, tag = 'output window, operand 0, single buffered']
    #allocation8 [shape = 'u8[8192]{0}', space=vmem, size = 0x2000, scoped, tag = 'output window, operand 1, single buffered']
    #allocation9 [shape = 's32[1]{0}', space=sflag, size = 0x4, scoped, tag = 'scoped memory for tpu_custom_call.1']
    %8 = vsyncpa [#allocation5], 0
    %9 = vsyncpa [#allocation6], 0
    %10 = vsyncpa [#allocation9], 0
    // Predicated region
    $region2: #{tpu_custom_call.1} parent=1 // pred_check
      _
    $region3: #{tpu_custom_call.1} parent=1 // pred_check_branch
      %12 = sbr.rel (0) target = $region5
    $region4: #{tpu_custom_call.1} parent=1 // pred_region
      %s13 = sadd.s32 0, 0
      %s14 = smul.u32 8, %s13
      %s16 = ssub.s32 2048, 2048
      %17 = vsyncadd [#allocation5], %s16
      %s18 = smul.addr %s14, 2
      %s19 = smul.addr %s18, 128
      %s20 = scalar_lea.hbm %s0, %s19
      %s21 = sshll.u32 [#allocation4], 4
      %s22 = int_to_ptr.vmem [resolvable:$true] %s21
      %27 = dma.hbm_to_vmem [thread:$0]  %s20, 2048, %s22, [#allocation5], 256, 256, 16
    $region5: #{tpu_custom_call.1} parent=1 // pred_fallthru
      _
    // Predicated region
    $region6: #{tpu_custom_call.1} parent=1 // pred_check
      _
    $region7: #{tpu_custom_call.1} parent=1 // pred_check_branch
      %29 = sbr.rel (0) target = $region9
    $region8: #{tpu_custom_call.1} parent=1 // pred_region
      %30 = dma.done [#allocation5], 2048
    $region9: #{tpu_custom_call.1} parent=1 // pred_fallthru
      _
    %s31 = sadd.s32 0, 0
    %s32 = smul.u32 8, %s31
    %p33 = scmp.eq.s32.totalorder 0, 0
    // Predicated region
    $region10: #{tpu_custom_call.1} parent=1 // pred_check
      %p34 = pneg %p33
    $region11: #{tpu_custom_call.1} parent=1 // pred_check_branch
      %36 = sbr.rel (%p34) target = $region13
    $region12: #{tpu_custom_call.1} parent=1 // pred_region
      %37 = vst [vmem:[#allocation2] sm:$0xff] -inf
      %38 = vst [vmem:[#allocation2 + $0x8] sm:$0xff] -inf
      %39 = vst [vmem:[#allocation3] sm:$0xff] 0.0
      %40 = vst [vmem:[#allocation3 + $0x8] sm:$0xff] 0.0
    $region13: #{tpu_custom_call.1} parent=1 // pred_fallthru
      _
    %v41 = vld [vmem:[#allocation4] sm:$0xff]
    %v42 = vld [vmem:[#allocation4 + $0x8] sm:$0xff]
    %v43 = vld [vmem:[#allocation4 + $0x10] sm:$0xff]
    %v44 = vld [vmem:[#allocation4 + $0x18] sm:$0xff]
    %v45 = vld [vmem:[#allocation4 + $0x20] sm:$0xff]
    %v46 = vld [vmem:[#allocation4 + $0x28] sm:$0xff]
    %v47 = vld [vmem:[#allocation4 + $0x30] sm:$0xff]
    %v48 = vld [vmem:[#allocation4 + $0x38] sm:$0xff]
    %v49 = vld [vmem:[#allocation4 + $0x40] sm:$0xff]
    %v50 = vld [vmem:[#allocation4 + $0x48] sm:$0xff]
    %v51 = vld [vmem:[#allocation4 + $0x50] sm:$0xff]
    %v52 = vld [vmem:[#allocation4 + $0x58] sm:$0xff]
    %v53 = vld [vmem:[#allocation4 + $0x60] sm:$0xff]
    %v54 = vld [vmem:[#allocation4 + $0x68] sm:$0xff]
    %v55 = vld [vmem:[#allocation4 + $0x70] sm:$0xff]
    %v56 = vld [vmem:[#allocation4 + $0x78] sm:$0xff]
    %v57 = vmax.f32 %v41, %v45
    %v58 = vmax.f32 %v43, %v47
    %v59 = vmax.f32 %v57, %v49
    %v60 = vmax.f32 %v58, %v51
    %v61 = vmax.f32 %v59, %v53
    %v62 = vmax.f32 %v60, %v55
    %v63 = vmax.f32 %v61, %v62
    %v64 = vmax.f32 %v42, %v46
    %v65 = vmax.f32 %v44, %v48
    %v66 = vmax.f32 %v64, %v50
    %v67 = vmax.f32 %v65, %v52
    %v68 = vmax.f32 %v66, %v54
    %v69 = vmax.f32 %v67, %v56
    %v70 = vmax.f32 %v68, %v69
    %v71 = vld [vmem:[#allocation2] sm:$0xff]
    %v72 = vld [vmem:[#allocation2 + $0x8] sm:$0xff]
    %v73 = vmax.f32 %v71, %v63
    %v74 = vmax.f32 %v72, %v70
    %vm75 = vcmp.eq.f32.partialorder %v73, -inf
    %vm76 = vcmp.eq.f32.partialorder %v74, -inf
    %v77 = vsel %vm75, 0.0, %v73
    %v78 = vsel %vm76, 0.0, %v74
    %v79 = vsub.f32 %v41, %v77
    %v80 = vsub.f32 %v42, %v78
    %v81 = vsub.f32 %v43, %v77
    %v82 = vsub.f32 %v44, %v78
    %v83 = vsub.f32 %v45, %v77
    %v84 = vsub.f32 %v46, %v78
    %v85 = vsub.f32 %v47, %v77
    %v86 = vsub.f32 %v48, %v78
    %v87 = vsub.f32 %v49, %v77
    %v88 = vsub.f32 %v50, %v78
    %v89 = vsub.f32 %v51, %v77
    %v90 = vsub.f32 %v52, %v78
    %v91 = vsub.f32 %v53, %v77
    %v92 = vsub.f32 %v54, %v78
    %v93 = vsub.f32 %v55, %v77
    %v94 = vsub.f32 %v56, %v78
    %v95 = vmul.f32 %v79, 1.442695
    %v96 = vpow.pop %v95
    %v97 = vmul.f32 %v80, 1.442695
    %v98 = vpow.pop %v97
    %v99 = vmul.f32 %v81, 1.442695
    %v100 = vpow.pop %v99
    %v101 = vmul.f32 %v82, 1.442695
    %v102 = vpow.pop %v101
    %v103 = vmul.f32 %v83, 1.442695
    %v104 = vpow.pop %v103
    %v105 = vmul.f32 %v84, 1.442695
    %v106 = vpow.pop %v105
    %v107 = vmul.f32 %v85, 1.442695
    %v108 = vpow.pop %v107
    %v109 = vmul.f32 %v86, 1.442695
    %v110 = vpow.pop %v109
    %v111 = vmul.f32 %v87, 1.442695
    %v112 = vpow.pop %v111
    %v113 = vmul.f32 %v88, 1.442695
    %v114 = vpow.pop %v113
    %v115 = vmul.f32 %v89, 1.442695
    %v116 = vpow.pop %v115
    %v117 = vmul.f32 %v90, 1.442695
    %v118 = vpow.pop %v117
    %v119 = vmul.f32 %v91, 1.442695
    %v120 = vpow.pop %v119
    %v121 = vmul.f32 %v92, 1.442695
    %v122 = vpow.pop %v121
    %v123 = vmul.f32 %v93, 1.442695
    %v124 = vpow.pop %v123
    %v125 = vmul.f32 %v94, 1.442695
    %v126 = vpow.pop %v125
    %v127 = vadd.f32 %v96, %v100
    %v128 = vadd.f32 %v127, %v104
    %v129 = vadd.f32 %v128, %v108
    %v130 = vadd.f32 %v129, %v112
    %v131 = vadd.f32 %v130, %v116
    %v132 = vadd.f32 %v131, %v120
    %v133 = vadd.f32 %v132, %v124
    %v134 = vadd.f32 %v98, %v102
    %v135 = vadd.f32 %v134, %v106
    %v136 = vadd.f32 %v135, %v110
    %v137 = vadd.f32 %v136, %v114
    %v138 = vadd.f32 %v137, %v118
    %v139 = vadd.f32 %v138, %v122
    %v140 = vadd.f32 %v139, %v126
    %v141 = vadd.f32 %v133, 0.0
    %v142 = vadd.f32 %v140, 0.0
    %v143 = vld [vmem:[#allocation3] sm:$0xff]
    %v144 = vld [vmem:[#allocation3 + $0x8] sm:$0xff]
    %v145 = vsub.f32 %v71, %v77
    %v146 = vsub.f32 %v72, %v78
    %v147 = vmul.f32 %v145, 1.442695
    %v148 = vpow.pop %v147
    %v149 = vmul.f32 %v146, 1.442695
    %v150 = vpow.pop %v149
    %v151 = vmul.f32 %v143, %v148
    %v152 = vmul.f32 %v144, %v150
    %v153 = vadd.f32 %v151, %v141
    %v154 = vadd.f32 %v152, %v142
    %155 = vst [vmem:[#allocation3] sm:$0xff] %v153
    %156 = vst [vmem:[#allocation3 + $0x8] sm:$0xff] %v154
    %157 = vst [vmem:[#allocation2] sm:$0xff] %v73
    %158 = vst [vmem:[#allocation2 + $0x8] sm:$0xff] %v74
    // Predicated region
    $region14: #{tpu_custom_call.1} parent=1 // pred_check
      %p159 = pneg %p33
    $region15: #{tpu_custom_call.1} parent=1 // pred_check_branch
      %161 = sbr.rel (%p159) target = $region17
    $region16: #{tpu_custom_call.1} parent=1 // pred_region
      %v162 = vld [vmem:[#allocation2] sm:$0xff]
      %v163 = vld [vmem:[#allocation2 + $0x8] sm:$0xff]
      %164 = vst [vmem:[#allocation7] sm:$0xff] %v162
      %165 = vst [vmem:[#allocation7 + $0x8] sm:$0xff] %v163
      %v166 = vld [vmem:[#allocation3] sm:$0xff]
      %v167 = vld [vmem:[#allocation3 + $0x8] sm:$0xff]
      %168 = vst [vmem:[#allocation8] sm:$0xff] %v166
      %169 = vst [vmem:[#allocation8 + $0x8] sm:$0xff] %v167
    $region17: #{tpu_custom_call.1} parent=1 // pred_fallthru
      _
    // Predicated region
    $region18: #{tpu_custom_call.1} parent=1 // pred_check
      _
    $region19: #{tpu_custom_call.1} parent=1 // pred_check_branch
      %171 = sbr.rel (0) target = $region21
    $region20: #{tpu_custom_call.1} parent=1 // pred_region
      %s173 = ssub.s32 256, 256
      %174 = vsyncadd [#allocation6], %s173
      %s176 = sshll.u32 [#allocation7], 4
      %s177 = int_to_ptr.vmem [resolvable:$true] %s176
      %179 = dma.vmem_to_hbm [thread:$0]  %s177, 256, %s1, [#allocation6]
    $region21: #{tpu_custom_call.1} parent=1 // pred_fallthru
      _
    // Predicated region
    $region22: #{tpu_custom_call.1} parent=1 // pred_check
      _
    $region23: #{tpu_custom_call.1} parent=1 // pred_check_branch
      %181 = sbr.rel (0) target = $region25
    $region24: #{tpu_custom_call.1} parent=1 // pred_region
      %s183 = ssub.s32 256, 256
      %184 = vsyncadd [#allocation9], %s183
      %s186 = sshll.u32 [#allocation8], 4
      %s187 = int_to_ptr.vmem [resolvable:$true] %s186
      %189 = dma.vmem_to_hbm [thread:$0]  %s187, 256, %s2, [#allocation9]
    $region25: #{tpu_custom_call.1} parent=1 // pred_fallthru
      _
    // Predicated region
    $region26: #{tpu_custom_call.1} parent=1 // pred_check
      _
    $region27: #{tpu_custom_call.1} parent=1 // pred_check_branch
      %191 = sbr.rel (0) target = $region29
    $region28: #{tpu_custom_call.1} parent=1 // pred_region
      %192 = dma.done [#allocation6], 256
    $region29: #{tpu_custom_call.1} parent=1 // pred_fallthru
      _
    // Predicated region
    $region30: #{tpu_custom_call.1} parent=1 // pred_check
      _
    $region31: #{tpu_custom_call.1} parent=1 // pred_check_branch
      %194 = sbr.rel (0) target = $region33
    $region32: #{tpu_custom_call.1} parent=1 // pred_region
      %195 = dma.done [#allocation9], 256
    $region33: #{tpu_custom_call.1} parent=1 // pred_fallthru
      _
    %196 = vsyncpa [#allocation5], 1
    %197 = vsyncpa [#allocation6], 1
    %198 = vsyncpa [#allocation9], 1

</llo_original>
